<compile_context>
chip_gen: v6e
topology: v6e:2x2x1
jax: 0.10.0
libtpu: 0.0.40
codegen_flags: <defaults>
</compile_context>

<pallas_src>
import jax
import jax.numpy as jnp
from jax import lax
from jax.experimental import pallas as pl
from jax.experimental.pallas import tpu as pltpu


def _round_up(n, m):
    return ((n + m - 1) // m) * m


def _cdiv(a, b):
    return -(-a // b)


def mlp_kernel(p_ref, x_ref, o_ref):
    # p_ref: (3, 8, 128) packed params (constant index_map -> VMEM resident)
    # x_ref: (TB, 8)  f32, native torch layout (batch on sublanes)
    # o_ref: (1, TB)  f32, lane-dense output block
    p = p_ref[...]
    x = x_ref[...]

    w1 = p[0, :, 0:8]   # (8, 8): rows 0..5 real, rest zero
    b1 = p[0, :, 8:9]   # (8, 1)
    w2 = p[1, :, 0:8]   # rows 0..3 real, cols 6..7 zero
    b2 = p[1, :, 8:9]
    w3 = p[2, :, 0:8]   # row 0 real, cols 4..7 zero
    b3 = p[2, :, 8:9]

    def sigmoid(z):
        # tanh form: a single EUP transcendental per element.
        return 0.5 * jnp.tanh(0.5 * z) + 0.5

    # Layer 1: contract the feature axis of w1 (o,f) and x (b,f) -> (8, TB).
    # Transposed-rhs MXU matmul; the batch ends up on the 128-lane axis.
    z1 = lax.dot_general(w1, x, (((1,), (1,)), ((), ())),
                         preferred_element_type=jnp.float32) + b1
    h1 = sigmoid(z1)

    # Layers 2 / 3: plain (8,8)@(8,TB) matmuls (zero padding cannot leak).
    h2 = sigmoid(jnp.dot(w2, h1, preferred_element_type=jnp.float32) + b2)
    z3 = jnp.dot(w3, h2, preferred_element_type=jnp.float32) + b3

    # Only row 0 is real -> lane-dense (1, TB) store.
    o_ref[...] = sigmoid(z3[0:1, :]).astype(o_ref.dtype)


def mlp_forward(x, w1, b1, w2, b2, w3, b3, *, tb=16384):
    """x: (B, 8).  Weights in torch layout: w (out, in), b (out,).
    Returns (B, 1) f32."""
    x = jnp.asarray(x, jnp.float32)
    B = int(x.shape[0])

    # --- batch tiling -------------------------------------------------------
    tb = max(128, _round_up(int(tb), 128))            # lane-dense tile width
    tb_eff = min(tb, _round_up(max(B, 1), 128))       # don't over-allocate tiny B
    # v7x has 2 TensorCores: prefer >= 2 grid steps when the batch allows it.
    if B > 256 and _cdiv(B, tb_eff) < 2:
        tb_eff = _round_up(_cdiv(B, 2), 128)
    num_tiles = _cdiv(max(B, 1), tb_eff)
    b_pad = num_tiles * tb_eff

    # Pad the batch only when ragged w.r.t. the tile (zero cost otherwise).
    if b_pad != B:
        x = jnp.pad(x, ((0, b_pad - B), (0, 0)))

    # --- packed parameter slab: [layer, 8, 128] -----------------------------
    #   [:, :, 0:8] zero-padded (8, 8) weight (out x in); [:, :, 8] bias.
    slab = jnp.zeros((3, 8, 128), jnp.float32)
    slab = slab.at[0, :6, :8].set(jnp.asarray(w1, jnp.float32))
    slab = slab.at[0, :6, 8].set(jnp.asarray(b1, jnp.float32))
    slab = slab.at[1, :4, :6].set(jnp.asarray(w2, jnp.float32))
    slab = slab.at[1, :4, 8].set(jnp.asarray(b2, jnp.float32))
    slab = slab.at[2, :1, :4].set(jnp.asarray(w3, jnp.float32))
    slab = slab.at[2, :1, 8].set(jnp.asarray(b3, jnp.float32))

    y_t = pl.pallas_call(
        mlp_kernel,
        out_shape=jax.ShapeDtypeStruct((1, b_pad), jnp.float32),
        grid=(num_tiles,),
        in_specs=[
            pl.BlockSpec((3, 8, 128), lambda i: (0, 0, 0)),   # resident params
            pl.BlockSpec((tb_eff, 8), lambda i: (i, 0)),      # native batch tile
        ],
        out_specs=pl.BlockSpec((1, tb_eff), lambda i: (0, i)),
        compiler_params=pltpu.CompilerParams(
            dimension_semantics=("parallel",),
            vmem_limit_bytes=32 * 1024 * 1024),
        cost_estimate=pl.CostEstimate(
            flops=384 * b_pad,
            transcendentals=17 * b_pad,
            bytes_accessed=36 * b_pad + 3 * 8 * 128 * 4),
    )(slab, x)

    return y_t[:, :B].T   # (B, 1)


def init_params(key):
    # Mimics torch.nn.Linear init: uniform(-1/sqrt(fan_in), +1/sqrt(fan_in)),
    # torch layout W (out, in), b (out,).
    def linear(key, fan_in, fan_out):
        kw, kb = jax.random.split(key)
        bound = 1.0 / jnp.sqrt(fan_in)
        w = jax.random.uniform(kw, (fan_out, fan_in), jnp.float32, -bound, bound)
        b = jax.random.uniform(kb, (fan_out,), jnp.float32, -bound, bound)
        return w, b

    k1, k2, k3 = jax.random.split(key, 3)
    w1, b1 = linear(k1, 8, 6)
    w2, b2 = linear(k2, 6, 4)
    w3, b3 = linear(k3, 4, 1)
    return w1, b1, w2, b2, w3, b3


def reference_forward(x, w1, b1, w2, b2, w3, b3):
    h1 = jax.nn.sigmoid(x @ w1.T + b1)
    h2 = jax.nn.sigmoid(h1 @ w2.T + b2)
    return jax.nn.sigmoid(h2 @ w3.T + b3)


if __name__ == "__main__":
    key = jax.random.PRNGKey(0)
    kx, kp = jax.random.split(key)

    batch = 8
    x = jax.random.normal(kx, (batch, 8), dtype=jnp.float32)
    params = init_params(kp)

    y = mlp_forward(x, *params)
    jax.block_until_ready(y)

    y_ref = reference_forward(x, *params)
    assert y.shape == (batch, 1)
    assert jnp.allclose(y, y_ref, atol=1e-5, rtol=1e-5)

    print("KERNEL_OK")
</pallas_src>

<mosaic_0001>
module attributes {stable_mosaic.version = 11 : i64} {
  func.func @mlp_kernel(%arg0: i32, %arg1: memref<3x8x128xf32, #tpu.memory_space<vmem>>, %arg2: memref<128x8xf32, #tpu.memory_space<vmem>>, %arg3: memref<1x128xf32, #tpu.memory_space<vmem>>) attributes {dimension_semantics = [#tpu.dimension_semantics<parallel>], iteration_bounds = array<i64: 1>, scalar_prefetch = 0 : i64, scratch_operands = 0 : i64, tpu.core_type = #tpu.core_type<tc>, window_params = [{pipeline_mode = #tpu.pipeline_mode<synchronous>, transform_indices = @transform_0, window_bounds = array<i64: 3, 8, 128>}, {transform_indices = @transform_1, window_bounds = array<i64: 128, 8>}, {transform_indices = @transform_2, window_bounds = array<i64: 1, 128>}]} {
    %c0 = arith.constant 0 : index
    %c0_0 = arith.constant 0 : index
    %c0_1 = arith.constant 0 : index
    %0 = vector.load %arg1[%c0, %c0_0, %c0_1] : memref<3x8x128xf32, #tpu.memory_space<vmem>>, vector<3x8x128xf32>
    %c0_2 = arith.constant 0 : index
    %c0_3 = arith.constant 0 : index
    %1 = vector.load %arg2[%c0_2, %c0_3] : memref<128x8xf32, #tpu.memory_space<vmem>>, vector<128x8xf32>
    %2 = vector.extract_strided_slice %0 {offsets = [0, 0, 0], sizes = [1, 8, 8], strides = [1, 1, 1]} : vector<3x8x128xf32> to vector<1x8x8xf32>
    %3 = vector.shape_cast %2 : vector<1x8x8xf32> to vector<8x8xf32>
    %4 = vector.extract_strided_slice %0 {offsets = [0, 0, 8], sizes = [1, 8, 1], strides = [1, 1, 1]} : vector<3x8x128xf32> to vector<1x8x1xf32>
    %5 = vector.shape_cast %4 : vector<1x8x1xf32> to vector<8x1xf32>
    %6 = vector.extract_strided_slice %0 {offsets = [1, 0, 0], sizes = [1, 8, 8], strides = [1, 1, 1]} : vector<3x8x128xf32> to vector<1x8x8xf32>
    %7 = vector.shape_cast %6 : vector<1x8x8xf32> to vector<8x8xf32>
    %8 = vector.extract_strided_slice %0 {offsets = [1, 0, 8], sizes = [1, 8, 1], strides = [1, 1, 1]} : vector<3x8x128xf32> to vector<1x8x1xf32>
    %9 = vector.shape_cast %8 : vector<1x8x1xf32> to vector<8x1xf32>
    %10 = vector.extract_strided_slice %0 {offsets = [2, 0, 0], sizes = [1, 8, 8], strides = [1, 1, 1]} : vector<3x8x128xf32> to vector<1x8x8xf32>
    %11 = vector.shape_cast %10 : vector<1x8x8xf32> to vector<8x8xf32>
    %12 = vector.extract_strided_slice %0 {offsets = [2, 0, 8], sizes = [1, 8, 1], strides = [1, 1, 1]} : vector<3x8x128xf32> to vector<1x8x1xf32>
    %13 = vector.shape_cast %12 : vector<1x8x1xf32> to vector<8x1xf32>
    %cst = arith.constant dense<0.000000e+00> : vector<8x128xf32>
    %14 = tpu.matmul %3, %1, %cst {dimension_numbers = #tpu.dot_dimension_numbers<[1], [1], [0], [0], [0, 0, 1, 0], [], []>} : vector<8x8xf32>, vector<128x8xf32>, vector<8x128xf32> -> vector<8x128xf32>
    %15 = vector.broadcast %5 : vector<8x1xf32> to vector<8x128xf32>
    %16 = arith.addf %14, %15 : vector<8x128xf32>
    %cst_4 = arith.constant 5.000000e-01 : f32
    %17 = vector.broadcast %cst_4 : f32 to vector<8x128xf32>
    %18 = arith.mulf %17, %16 : vector<8x128xf32>
    %19 = math.tanh %18 : vector<8x128xf32>
    %cst_5 = arith.constant 5.000000e-01 : f32
    %20 = vector.broadcast %cst_5 : f32 to vector<8x128xf32>
    %21 = arith.mulf %20, %19 : vector<8x128xf32>
    %cst_6 = arith.constant 5.000000e-01 : f32
    %22 = vector.broadcast %cst_6 : f32 to vector<8x128xf32>
    %23 = arith.addf %21, %22 : vector<8x128xf32>
    %cst_7 = arith.constant dense<0.000000e+00> : vector<8x128xf32>
    %24 = tpu.matmul %7, %23, %cst_7 {dimension_numbers = #tpu.dot_dimension_numbers<[1], [0], [0], [1], [0, 0, 1, 1], [], []>} : vector<8x8xf32>, vector<8x128xf32>, vector<8x128xf32> -> vector<8x128xf32>
    %25 = vector.broadcast %9 : vector<8x1xf32> to vector<8x128xf32>
    %26 = arith.addf %24, %25 : vector<8x128xf32>
    %cst_8 = arith.constant 5.000000e-01 : f32
    %27 = vector.broadcast %cst_8 : f32 to vector<8x128xf32>
    %28 = arith.mulf %27, %26 : vector<8x128xf32>
    %29 = math.tanh %28 : vector<8x128xf32>
    %cst_9 = arith.constant 5.000000e-01 : f32
    %30 = vector.broadcast %cst_9 : f32 to vector<8x128xf32>
    %31 = arith.mulf %30, %29 : vector<8x128xf32>
    %cst_10 = arith.constant 5.000000e-01 : f32
    %32 = vector.broadcast %cst_10 : f32 to vector<8x128xf32>
    %33 = arith.addf %31, %32 : vector<8x128xf32>
    %cst_11 = arith.constant dense<0.000000e+00> : vector<8x128xf32>
    %34 = tpu.matmul %11, %33, %cst_11 {dimension_numbers = #tpu.dot_dimension_numbers<[1], [0], [0], [1], [0, 0, 1, 1], [], []>} : vector<8x8xf32>, vector<8x128xf32>, vector<8x128xf32> -> vector<8x128xf32>
    %35 = vector.broadcast %13 : vector<8x1xf32> to vector<8x128xf32>
    %36 = arith.addf %34, %35 : vector<8x128xf32>
    %37 = vector.extract_strided_slice %36 {offsets = [0, 0], sizes = [1, 128], strides = [1, 1]} : vector<8x128xf32> to vector<1x128xf32>
    %cst_12 = arith.constant 5.000000e-01 : f32
    %38 = vector.broadcast %cst_12 : f32 to vector<1x128xf32>
    %39 = arith.mulf %38, %37 : vector<1x128xf32>
    %40 = math.tanh %39 : vector<1x128xf32>
    %cst_13 = arith.constant 5.000000e-01 : f32
    %41 = vector.broadcast %cst_13 : f32 to vector<1x128xf32>
    %42 = arith.mulf %41, %40 : vector<1x128xf32>
    %cst_14 = arith.constant 5.000000e-01 : f32
    %43 = vector.broadcast %cst_14 : f32 to vector<1x128xf32>
    %44 = arith.addf %42, %43 : vector<1x128xf32>
    %c0_15 = arith.constant 0 : index
    %c0_16 = arith.constant 0 : index
    %45 = vector.load %arg3[%c0_15, %c0_16] : memref<1x128xf32, #tpu.memory_space<vmem>>, vector<1x128xf32>
    tpu.vector_store %arg3[%c0_15, %c0_16], %44 {strides = array<i32>} : memref<1x128xf32, #tpu.memory_space<vmem>>, vector<1x128xf32>,
    return
  }
  func.func @transform_0(%arg0: i32) -> (i32, i32, i32) {
    %c0_i32 = arith.constant 0 : i32
    %c0_i32_0 = arith.constant 0 : i32
    %c0_i32_1 = arith.constant 0 : i32
    %c0_i32_2 = arith.constant 0 : i32
    return %c0_i32, %c0_i32_0, %c0_i32_1 : i32, i32, i32
  }
  func.func @transform_1(%arg0: i32) -> (i32, i32) {
    %c0_i32 = arith.constant 0 : i32
    %c0_i32_0 = arith.constant 0 : i32
    return %arg0, %c0_i32 : i32, i32
  }
  func.func @transform_2(%arg0: i32) -> (i32, i32) {
    %c0_i32 = arith.constant 0 : i32
    %c0_i32_0 = arith.constant 0 : i32
    return %c0_i32, %arg0 : i32, i32
  }
}

</mosaic_0001>

<llo_original>
// kernel: tpu_custom_call.1
$region0: #{tpu_custom_call.1}
  #allocation0 [shape = 'u32[]', space=smem, size = 0x4, offset = 0x4, fixed_abs, tag = 'smem constant byte address 0x4 - core index']
  #allocation1 [shape = 'u32[144,128]{1,0:T(1,128)}', space=vmem, size = 0x12000, scoped, tag = 'internal scratch']
  %s0 = inlined_call_operand.vmem [shape: f32[3,8,128], index: 0, kind: input, shape index: {}]
  %s1 = inlined_call_operand.vmem [shape: f32[128,8], index: 1, kind: input, shape index: {}]
  %s2 = inlined_call_operand.hbm [shape: f32[1,128], index: 2, kind: output, shape index: {}]
  %s3 = sld [smem:[#allocation0]]
  $region18: #{tpu_custom_call.1} parent=0
    _
  %s5 = ssub.s32 1, %s3
  %s6 = scalar_select 0, %s5, %s3
  $region1: #{tpu_custom_call.1} parent=0
    #allocation2 [shape = 'u8[512]{0}', space=vmem, size = 0x400, scoped, tag = 'output window, operand 0, single buffered']
    #allocation3 [shape = 's32[1]{0}', space=sflag, size = 0x4, scoped, tag = 'scoped memory for tpu_custom_call.1']
    %7 = vsyncpa [#allocation3], 0
    // Predicated region
    $region2: #{tpu_custom_call.1} parent=1 // pred_check
      _
    $region3: #{tpu_custom_call.1} parent=1 // pred_check_branch
      %9 = sbr.rel (0) target = $region5
    $region4: #{tpu_custom_call.1} parent=1 // pred_region
      _
    $region5: #{tpu_custom_call.1} parent=1 // pred_fallthru
      _
    // Predicated region
    $region6: #{tpu_custom_call.1} parent=1 // pred_check
      _
    $region7: #{tpu_custom_call.1} parent=1 // pred_check_branch
      %11 = sbr.rel (0) target = $region9
    $region8: #{tpu_custom_call.1} parent=1 // pred_region
      _
    $region9: #{tpu_custom_call.1} parent=1 // pred_fallthru
      _
    %v12 = vld [vmem:[%s0] sm:$0xff]
    %v13 = vld [vmem:[%s0 + $0x8] sm:$0xff]
    %v14 = vld [vmem:[%s0 + $0x10] sm:$0xff]
    %v15 = vld [vmem:[%s1] sm:$0xff]
    %v16 = vld [vmem:[%s1 + $0x8] sm:$0xff]
    %v17 = vld [vmem:[%s1 + $0x10] sm:$0xff]
    %v18 = vld [vmem:[%s1 + $0x18] sm:$0xff]
    %v19 = vld [vmem:[%s1 + $0x20] sm:$0xff]
    %v20 = vld [vmem:[%s1 + $0x28] sm:$0xff]
    %v21 = vld [vmem:[%s1 + $0x30] sm:$0xff]
    %v22 = vld [vmem:[%s1 + $0x38] sm:$0xff]
    %v23 = vld [vmem:[%s1 + $0x40] sm:$0xff]
    %v24 = vld [vmem:[%s1 + $0x48] sm:$0xff]
    %v25 = vld [vmem:[%s1 + $0x50] sm:$0xff]
    %v26 = vld [vmem:[%s1 + $0x58] sm:$0xff]
    %v27 = vld [vmem:[%s1 + $0x60] sm:$0xff]
    %v28 = vld [vmem:[%s1 + $0x68] sm:$0xff]
    %v29 = vld [vmem:[%s1 + $0x70] sm:$0xff]
    %v30 = vld [vmem:[%s1 + $0x78] sm:$0xff]
    %32 = vset.pattern.permute.xlu0 8
    %33 = vperm.xlu0 %32, %v12
    %v34 = vpop.permute.xlu0 %33
    %vm36 = vcmask 64512
    %v37 = vsel %vm36, %v12, 0
    %v40 = vsel %vm36, %v15, 0
    %v43 = vsel %vm36, %v16, 0
    %v46 = vsel %vm36, %v17, 0
    %v49 = vsel %vm36, %v18, 0
    %v52 = vsel %vm36, %v19, 0
    %v55 = vsel %vm36, %v20, 0
    %v58 = vsel %vm36, %v21, 0
    %v61 = vsel %vm36, %v22, 0
    %v64 = vsel %vm36, %v23, 0
    %v67 = vsel %vm36, %v24, 0
    %v70 = vsel %vm36, %v25, 0
    %v73 = vsel %vm36, %v26, 0
    %v76 = vsel %vm36, %v27, 0
    %v79 = vsel %vm36, %v28, 0
    %v82 = vsel %vm36, %v29, 0
    %v85 = vsel %vm36, %v30, 0
    %87 = vmatprep.subr.mxu0 0.0
    %88 = vmatpush1.xpose.msra.mxu0 %v85
    %89 = vmatprep.subr.mxu0 0.0
    %90 = vmatpush1.xpose.msra.mxu0 %v82
    %91 = vmatprep.subr.mxu0 0.0
    %92 = vmatpush1.xpose.msra.mxu0 %v79
    %93 = vmatprep.subr.mxu0 0.0
    %94 = vmatpush1.xpose.msra.mxu0 %v76
    %95 = vmatprep.subr.mxu0 0.0
    %96 = vmatpush1.xpose.msra.mxu0 %v73
    %97 = vmatprep.subr.mxu0 0.0
    %98 = vmatpush1.xpose.msra.mxu0 %v70
    %99 = vmatprep.subr.mxu0 0.0
    %100 = vmatpush1.xpose.msra.mxu0 %v67
    %101 = vmatprep.subr.mxu0 0.0
    %102 = vmatpush1.xpose.msra.mxu0 %v64
    %103 = vmatprep.subr.mxu0 0.0
    %104 = vmatpush1.xpose.msra.mxu0 %v61
    %105 = vmatprep.subr.mxu0 0.0
    %106 = vmatpush1.xpose.msra.mxu0 %v58
    %107 = vmatprep.subr.mxu0 0.0
    %108 = vmatpush1.xpose.msra.mxu0 %v55
    %109 = vmatprep.subr.mxu0 0.0
    %110 = vmatpush1.xpose.msra.mxu0 %v52
    %111 = vmatprep.subr.mxu0 0.0
    %112 = vmatpush1.xpose.msra.mxu0 %v49
    %113 = vmatprep.subr.mxu0 0.0
    %114 = vmatpush1.xpose.msra.mxu0 %v46
    %115 = vmatprep.subr.mxu0 0.0
    %116 = vmatpush1.xpose.msra.mxu0 %v43
    %117 = vmatprep.subr.mxu0 0.0
    %118 = vmatpush1.xpose.msra.mxu0 %v40
    %119 = vmatprep.subr.mxu0 0.0
    %120 = vmatpush2.xpose.msra.mxu0 0.0
    %121 = vmatprep.subr.mxu0 0.0
    %122 = vmatpush2.xpose.msra.mxu0 0.0
    %123 = vmatprep.subr.mxu0 0.0
    %124 = vmatpush2.xpose.msra.mxu0 0.0
    %125 = vmatprep.subr.mxu0 0.0
    %126 = vmatpush2.xpose.msra.mxu0 0.0
    %127 = vmatprep.subr.mxu0 0.0
    %128 = vmatpush2.xpose.msra.mxu0 0.0
    %129 = vmatprep.subr.mxu0 0.0
    %130 = vmatpush2.xpose.msra.mxu0 0.0
    %131 = vmatprep.subr.mxu0 0.0
    %132 = vmatpush2.xpose.msra.mxu0 0.0
    %133 = vmatprep.subr.mxu0 0.0
    %134 = vmatpush2.xpose.msra.mxu0 0.0
    %135 = vmatprep.subr.mxu0 0.0
    %136 = vmatpush2.xpose.msra.mxu0 0.0
    %137 = vmatprep.subr.mxu0 0.0
    %138 = vmatpush2.xpose.msra.mxu0 0.0
    %139 = vmatprep.subr.mxu0 0.0
    %140 = vmatpush2.xpose.msra.mxu0 0.0
    %141 = vmatprep.subr.mxu0 0.0
    %142 = vmatpush2.xpose.msra.mxu0 0.0
    %143 = vmatprep.subr.mxu0 0.0
    %144 = vmatpush2.xpose.msra.mxu0 0.0
    %145 = vmatprep.subr.mxu0 0.0
    %146 = vmatpush2.xpose.msra.mxu0 0.0
    %147 = vmatprep.subr.mxu0 0.0
    %148 = vmatpush2.xpose.msra.mxu0 0.0
    %149 = vmatprep.subr.mxu0 0.0
    %150 = vmatpush2.xpose.msra.mxu0 0.0
    %151 = vmatprep.mubr.f32.mxu0 0.0
    %152 = vmatmul.mubr.f32.gmra.mxu0 %v37
    %v153 = vpop.f32.mrf.mxu0
    %v154 = vadd.f32 %v34, %v153
    %v155 = vpop.f32.mrf.mxu0
    %156 = vdwg.mxu0
    %v157 = vmul.f32 %v154, 0.5
    %v158 = vtanh.pop %v157
    %v159 = vmul.f32 %v158, 0.5
    %v160 = vadd.f32 %v159, 0.5
    %162 = vset.pattern.permute.xlu0 8
    %163 = vperm.xlu0 %162, %v13
    %v164 = vpop.permute.xlu0 %163
    %v166 = vsel %vm36, %v13, 0
    %168 = vmatprep.subr.mxu0 0.0
    %169 = vmatpush1.msra.mxu0 0.0
    %170 = vmatprep.subr.mxu0 0.0
    %171 = vmatpush1.msra.mxu0 0.0
    %172 = vmatprep.subr.mxu0 0.0
    %173 = vmatpush1.msra.mxu0 0.0
    %174 = vmatprep.subr.mxu0 0.0
    %175 = vmatpush1.msra.mxu0 0.0
    %176 = vmatprep.subr.mxu0 0.0
    %177 = vmatpush1.msra.mxu0 0.0
    %178 = vmatprep.subr.mxu0 0.0
    %179 = vmatpush1.msra.mxu0 0.0
    %180 = vmatprep.subr.mxu0 0.0
    %181 = vmatpush1.msra.mxu0 0.0
    %182 = vmatprep.subr.mxu0 0.0
    %183 = vmatpush1.msra.mxu0 0.0
    %184 = vmatprep.subr.mxu0 0.0
    %185 = vmatpush1.msra.mxu0 0.0
    %186 = vmatprep.subr.mxu0 0.0
    %187 = vmatpush1.msra.mxu0 0.0
    %188 = vmatprep.subr.mxu0 0.0
    %189 = vmatpush1.msra.mxu0 0.0
    %190 = vmatprep.subr.mxu0 0.0
    %191 = vmatpush1.msra.mxu0 0.0
    %192 = vmatprep.subr.mxu0 0.0
    %193 = vmatpush1.msra.mxu0 0.0
    %194 = vmatprep.subr.mxu0 0.0
    %195 = vmatpush1.msra.mxu0 0.0
    %196 = vmatprep.subr.mxu0 0.0
    %197 = vmatpush1.msra.mxu0 0.0
    %198 = vmatprep.subr.mxu0 0.0
    %199 = vmatpush1.msra.mxu0 %v160
    %200 = vmatprep.subr.mxu0 0.0
    %201 = vmatpush2.msra.mxu0 0.0
    %202 = vmatprep.subr.mxu0 0.0
    %203 = vmatpush2.msra.mxu0 0.0
    %204 = vmatprep.subr.mxu0 0.0
    %205 = vmatpush2.msra.mxu0 0.0
    %206 = vmatprep.subr.mxu0 0.0
    %207 = vmatpush2.msra.mxu0 0.0
    %208 = vmatprep.subr.mxu0 0.0
    %209 = vmatpush2.msra.mxu0 0.0
    %210 = vmatprep.subr.mxu0 0.0
    %211 = vmatpush2.msra.mxu0 0.0
    %212 = vmatprep.subr.mxu0 0.0
    %213 = vmatpush2.msra.mxu0 0.0
    %214 = vmatprep.subr.mxu0 0.0
    %215 = vmatpush2.msra.mxu0 0.0
    %216 = vmatprep.subr.mxu0 0.0
    %217 = vmatpush2.msra.mxu0 0.0
    %218 = vmatprep.subr.mxu0 0.0
    %219 = vmatpush2.msra.mxu0 0.0
    %220 = vmatprep.subr.mxu0 0.0
    %221 = vmatpush2.msra.mxu0 0.0
    %222 = vmatprep.subr.mxu0 0.0
    %223 = vmatpush2.msra.mxu0 0.0
    %224 = vmatprep.subr.mxu0 0.0
    %225 = vmatpush2.msra.mxu0 0.0
    %226 = vmatprep.subr.mxu0 0.0
    %227 = vmatpush2.msra.mxu0 0.0
    %228 = vmatprep.subr.mxu0 0.0
    %229 = vmatpush2.msra.mxu0 0.0
    %230 = vmatprep.subr.mxu0 0.0
    %231 = vmatpush2.msra.mxu0 0.0
    %232 = vmatprep.mubr.f32.mxu0 0.0
    %233 = vmatmul.mubr.f32.gmra.mxu0 %v166
    %v234 = vpop.f32.mrf.mxu0
    %v235 = vadd.f32 %v164, %v234
    %v236 = vpop.f32.mrf.mxu0
    %237 = vdwg.mxu0
    %v238 = vmul.f32 %v235, 0.5
    %v239 = vtanh.pop %v238
    %v240 = vmul.f32 %v239, 0.5
    %v241 = vadd.f32 %v240, 0.5
    %243 = vset.pattern.permute.xlu0 8
    %244 = vperm.xlu0 %243, %v14
    %v245 = vpop.permute.xlu0 %244
    %v247 = vsel %vm36, %v14, 0
    %249 = vmatprep.subr.mxu0 0.0
    %250 = vmatpush1.msra.mxu0 0.0
    %251 = vmatprep.subr.mxu0 0.0
    %252 = vmatpush1.msra.mxu0 0.0
    %253 = vmatprep.subr.mxu0 0.0
    %254 = vmatpush1.msra.mxu0 0.0
    %255 = vmatprep.subr.mxu0 0.0
    %256 = vmatpush1.msra.mxu0 0.0
    %257 = vmatprep.subr.mxu0 0.0
    %258 = vmatpush1.msra.mxu0 0.0
    %259 = vmatprep.subr.mxu0 0.0
    %260 = vmatpush1.msra.mxu0 0.0
    %261 = vmatprep.subr.mxu0 0.0
    %262 = vmatpush1.msra.mxu0 0.0
    %263 = vmatprep.subr.mxu0 0.0
    %264 = vmatpush1.msra.mxu0 0.0
    %265 = vmatprep.subr.mxu0 0.0
    %266 = vmatpush1.msra.mxu0 0.0
    %267 = vmatprep.subr.mxu0 0.0
    %268 = vmatpush1.msra.mxu0 0.0
    %269 = vmatprep.subr.mxu0 0.0
    %270 = vmatpush1.msra.mxu0 0.0
    %271 = vmatprep.subr.mxu0 0.0
    %272 = vmatpush1.msra.mxu0 0.0
    %273 = vmatprep.subr.mxu0 0.0
    %274 = vmatpush1.msra.mxu0 0.0
    %275 = vmatprep.subr.mxu0 0.0
    %276 = vmatpush1.msra.mxu0 0.0
    %277 = vmatprep.subr.mxu0 0.0
    %278 = vmatpush1.msra.mxu0 0.0
    %279 = vmatprep.subr.mxu0 0.0
    %280 = vmatpush1.msra.mxu0 %v241
    %281 = vmatprep.subr.mxu0 0.0
    %282 = vmatpush2.msra.mxu0 0.0
    %283 = vmatprep.subr.mxu0 0.0
    %284 = vmatpush2.msra.mxu0 0.0
    %285 = vmatprep.subr.mxu0 0.0
    %286 = vmatpush2.msra.mxu0 0.0
    %287 = vmatprep.subr.mxu0 0.0
    %288 = vmatpush2.msra.mxu0 0.0
    %289 = vmatprep.subr.mxu0 0.0
    %290 = vmatpush2.msra.mxu0 0.0
    %291 = vmatprep.subr.mxu0 0.0
    %292 = vmatpush2.msra.mxu0 0.0
    %293 = vmatprep.subr.mxu0 0.0
    %294 = vmatpush2.msra.mxu0 0.0
    %295 = vmatprep.subr.mxu0 0.0
    %296 = vmatpush2.msra.mxu0 0.0
    %297 = vmatprep.subr.mxu0 0.0
    %298 = vmatpush2.msra.mxu0 0.0
    %299 = vmatprep.subr.mxu0 0.0
    %300 = vmatpush2.msra.mxu0 0.0
    %301 = vmatprep.subr.mxu0 0.0
    %302 = vmatpush2.msra.mxu0 0.0
    %303 = vmatprep.subr.mxu0 0.0
    %304 = vmatpush2.msra.mxu0 0.0
    %305 = vmatprep.subr.mxu0 0.0
    %306 = vmatpush2.msra.mxu0 0.0
    %307 = vmatprep.subr.mxu0 0.0
    %308 = vmatpush2.msra.mxu0 0.0
    %309 = vmatprep.subr.mxu0 0.0
    %310 = vmatpush2.msra.mxu0 0.0
    %311 = vmatprep.subr.mxu0 0.0
    %312 = vmatpush2.msra.mxu0 0.0
    %313 = vmatprep.mubr.f32.mxu0 0.0
    %314 = vmatmul.mubr.f32.gmra.mxu0 %v247
    %v315 = vpop.f32.mrf.mxu0
    %v316 = vadd.f32 %v245, %v315
    %v317 = vpop.f32.mrf.mxu0
    %318 = vdwg.mxu0
    %v319 = vmul.f32 %v316, 0.5
    %v320 = vtanh.pop %v319
    %v321 = vmul.f32 %v320, 0.5
    %v322 = vadd.f32 %v321, 0.5
    %323 = vst [vmem:[#allocation2] sm:$0x1] %v322
    // Predicated region
    $region10: #{tpu_custom_call.1} parent=1 // pred_check
      _
    $region11: #{tpu_custom_call.1} parent=1 // pred_check_branch
      %325 = sbr.rel (0) target = $region13
    $region12: #{tpu_custom_call.1} parent=1 // pred_region
      %s327 = ssub.s32 16, 16
      %328 = vsyncadd [#allocation3], %s327
      %s330 = sshll.u32 [#allocation2], 4
      %s331 = int_to_ptr.vmem [resolvable:$true] %s330
      %333 = dma.vmem_to_hbm [thread:$0]  %s331, 16, %s2, [#allocation3]
    $region13: #{tpu_custom_call.1} parent=1 // pred_fallthru
      _
    // Predicated region
    $region14: #{tpu_custom_call.1} parent=1 // pred_check
      _
    $region15: #{tpu_custom_call.1} parent=1 // pred_check_branch
      %335 = sbr.rel (0) target = $region17
    $region16: #{tpu_custom_call.1} parent=1 // pred_region
      %336 = dma.done [#allocation3], 16
    $region17: #{tpu_custom_call.1} parent=1 // pred_fallthru
      _
    %337 = vsyncpa [#allocation3], 1

</llo_original>
